<compile_context>
chip_gen: v5e
topology: v5e:2x2
jax: 0.10.0
libtpu: 0.0.40
codegen_flags: <defaults>
</compile_context>

<pallas_src>
import jax
import jax.numpy as jnp
from jax.experimental import pallas as pl
from jax.experimental.pallas import tpu as pltpu


# ---------------------------------------------------------------------------
# Kernels
# ---------------------------------------------------------------------------

def _mlp_kernel_resident(x_ref, w1_ref, b1_ref, w2_ref, b2_ref, o_ref):
    """Fused MLP, both weight matrices VMEM-resident.

    hidden = relu(x @ W1 + b1);  out = hidden @ W2 + b2.
    x arrives in its native dtype and is cast to the MXU compute dtype
    in-kernel (VPU filler hidden under the MXU); both matmuls accumulate f32.
    """
    x = x_ref[...].astype(w1_ref.dtype)
    h = jnp.dot(x, w1_ref[...], preferred_element_type=jnp.float32)
    h = jnp.maximum(h + b1_ref[...], 0.0)
    out = jnp.dot(h.astype(w2_ref.dtype), w2_ref[...],
                  preferred_element_type=jnp.float32)
    o_ref[...] = (out + b2_ref[...]).astype(o_ref.dtype)


def _mlp_kernel_streamed(x_ref, w1_ref, b1_ref, w2_ref, b2_ref, o_ref, h_ref):
    """MLP with W2 streamed along an output-column (N) grid axis.

    grid = (batch tiles, N tiles). The hidden activation for the current
    batch tile is computed once (N index == 0) into a VMEM scratch and reused
    for every streamed W2 column tile.
    """
    @pl.when(pl.program_id(1) == 0)
    def _():
        x = x_ref[...].astype(w1_ref.dtype)
        h = jnp.dot(x, w1_ref[...], preferred_element_type=jnp.float32)
        h = jnp.maximum(h + b1_ref[...], 0.0)
        h_ref[...] = h.astype(h_ref.dtype)

    out = jnp.dot(h_ref[...], w2_ref[...], preferred_element_type=jnp.float32)
    o_ref[...] = (out + b2_ref[...]).astype(o_ref.dtype)


# ---------------------------------------------------------------------------
# Wrapper
# ---------------------------------------------------------------------------

def _round_up(x, m):
    return ((x + m - 1) // m) * m


def _cdiv(a, b):
    return -(-a // b)


def _vmem_capacity_bytes():
    try:
        return int(pltpu.get_tpu_info().vmem_capacity_bytes)
    except Exception:
        return 64 * 1024 * 1024  # v7x per-TensorCore: the most constrained gen


def _choose_tb(batch, block_b):
    if batch >= block_b:
        return block_b                        # ragged last tile is fine
    if batch >= 512:
        # Cap the tile so the batch grid has >= 2 steps: with
        # dimension_semantics=("parallel",) both v7x TensorCores get work.
        return _round_up(_cdiv(batch, 2), 256)
    return _round_up(batch, 16)               # tiny batch: one packed tile


def _const_block_spec(shape, index_map, buffered):
    # Constant index_map -> block is fetched once; single-buffer it so the
    # resident weights don't reserve 2x their size in VMEM.
    if buffered:
        return pl.BlockSpec(shape, index_map, pipeline_mode=pl.Buffered(1))
    return pl.BlockSpec(shape, index_map)


def mlp_forward(x, w1, b1, w2, b2, *, block_b=512, compute_dtype=jnp.bfloat16,
                out_dtype=None, force_streaming=False):
    """x: (B, D_in); w1: (D_in, H); b1: (H,); w2: (H, H); b2: (H,).

    Returns (B, H) in `out_dtype` (default: x.dtype). Matmuls run in
    `compute_dtype` on the MXU with f32 accumulation; any zero padding to
    lane-dense shapes is mathematically exact.
    """
    B, D_in = x.shape
    H = w1.shape[1]
    out_dtype = jnp.dtype(out_dtype if out_dtype is not None else x.dtype)
    cd = jnp.dtype(compute_dtype)
    x_dtype = jnp.dtype(x.dtype)

    # Lane-dense padding of feature dims (exact: padded hidden units are
    # relu(0)=0 and padded W2 rows are 0, so the math is unchanged).
    D_pad = _round_up(D_in, 128)
    H_pad = _round_up(H, 128)

    tb = _choose_tb(B, block_b)
    B_pad = tb if tb > B else B                # only tiny batches get padded
    nb = _cdiv(B_pad, tb)

    # --- operand preparation (in a real model, pad/cast weights once outside
    #     the hot path; done here so the wrapper is self-contained) ----------
    if (D_pad != D_in) or (B_pad != B):
        x_in = jnp.zeros((B_pad, D_pad), x_dtype).at[:B, :D_in].set(x)
    else:
        x_in = x                               # no wrapper copy / cast of x

    if (D_pad != D_in) or (H_pad != H):
        w1p = jnp.zeros((D_pad, H_pad), cd).at[:D_in, :H].set(w1.astype(cd))
    else:
        w1p = w1.astype(cd)
    if H_pad != H:
        w2p = jnp.zeros((H_pad, H_pad), cd).at[:H, :H].set(w2.astype(cd))
        b1p = jnp.zeros((1, H_pad), jnp.float32).at[0, :H].set(
            b1.astype(jnp.float32))
        b2p = jnp.zeros((1, H_pad), jnp.float32).at[0, :H].set(
            b2.astype(jnp.float32))
    else:
        w2p = w2.astype(cd)
        b1p = b1.astype(jnp.float32).reshape(1, H)
        b2p = b2.astype(jnp.float32).reshape(1, H)

    # --- VMEM plan / path selection -----------------------------------------
    vmem_cap = _vmem_capacity_bytes()
    vmem_budget = int(0.9 * vmem_cap)          # never over-request physical VMEM
    x_item = x_dtype.itemsize
    o_item = out_dtype.itemsize
    w_bytes = (D_pad * H_pad + H_pad * H_pad) * cd.itemsize   # single-buffered
    bias_bytes = 2 * H_pad * 4
    io_bytes = 2 * tb * (D_pad * x_item + H_pad * o_item)     # double-buffered
    hid_bytes = tb * H_pad * 4                                # f32 intermediate
    resident_plan = w_bytes + bias_bytes + io_bytes + hid_bytes

    use_streaming = force_streaming or (resident_plan > int(0.8 * vmem_cap))

    if not use_streaming:
        vmem_limit = min(max(int(1.25 * resident_plan), 32 * 1024 * 1024),
                         vmem_budget)

        def run(weights_buffered):
            in_specs = [
                pl.BlockSpec((tb, D_pad), lambda i: (i, 0)),     # x: batch-tiled
                _const_block_spec((D_pad, H_pad), lambda i: (0, 0),
                                  weights_buffered),             # W1 resident
                _const_block_spec((1, H_pad), lambda i: (0, 0),
                                  weights_buffered),             # b1 resident
                _const_block_spec((H_pad, H_pad), lambda i: (0, 0),
                                  weights_buffered),             # W2 resident
                _const_block_spec((1, H_pad), lambda i: (0, 0),
                                  weights_buffered),             # b2 resident
            ]
            return pl.pallas_call(
                _mlp_kernel_resident,
                out_shape=jax.ShapeDtypeStruct((B_pad, H_pad), out_dtype),
                grid_spec=pltpu.PrefetchScalarGridSpec(
                    num_scalar_prefetch=0,
                    grid=(nb,),
                    in_specs=in_specs,
                    out_specs=pl.BlockSpec((tb, H_pad), lambda i: (i, 0)),
                ),
                compiler_params=pltpu.CompilerParams(
                    dimension_semantics=("parallel",),
                    vmem_limit_bytes=vmem_limit),
            )(x_in, w1p, b1p, w2p, b2p)

        try:
            out = run(True)    # single-buffered resident weights (Buffered(1))
        except Exception:
            out = run(False)   # fallback for jax versions without pipeline_mode
    else:
        # W2-streaming path: batch-tiled x/out plus an output-column grid axis
        # streaming (H_pad, tn) tiles of W2; the hidden activation lives in a
        # VMEM scratch and is reused across the N axis.
        tn = 256 if H_pad % 256 == 0 else 128
        nn = H_pad // tn
        stream_plan = (D_pad * H_pad * cd.itemsize          # W1 resident
                       + bias_bytes
                       + 2 * H_pad * tn * cd.itemsize       # streamed W2 tiles
                       + 2 * tb * (D_pad * x_item + tn * o_item)
                       + tb * H_pad * cd.itemsize           # hidden scratch
                       + hid_bytes)                         # f32 temp (1st dot)
        vmem_limit = min(max(int(1.25 * stream_plan), 32 * 1024 * 1024),
                         vmem_budget)
        # TODO(synk): if resident W1 alone exceeds the VMEM budget, also stream
        # W1 (K/N tiles) with a pl.when-initialized f32 accumulator.

        def run(weights_buffered):
            in_specs = [
                pl.BlockSpec((tb, D_pad), lambda i, j: (i, 0)),   # x
                _const_block_spec((D_pad, H_pad), lambda i, j: (0, 0),
                                  weights_buffered),              # W1 resident
                _const_block_spec((1, H_pad), lambda i, j: (0, 0),
                                  weights_buffered),              # b1 resident
                pl.BlockSpec((H_pad, tn), lambda i, j: (0, j)),   # W2 streamed
                pl.BlockSpec((1, tn), lambda i, j: (0, j)),       # b2 streamed
            ]
            return pl.pallas_call(
                _mlp_kernel_streamed,
                out_shape=jax.ShapeDtypeStruct((B_pad, H_pad), out_dtype),
                grid_spec=pltpu.PrefetchScalarGridSpec(
                    num_scalar_prefetch=0,
                    grid=(nb, nn),
                    in_specs=in_specs,
                    out_specs=pl.BlockSpec((tb, tn), lambda i, j: (i, j)),
                    scratch_shapes=[pltpu.VMEM((tb, H_pad), cd)],
                ),
                compiler_params=pltpu.CompilerParams(
                    dimension_semantics=("parallel", "arbitrary"),
                    vmem_limit_bytes=vmem_limit),
            )(x_in, w1p, b1p, w2p, b2p)

        try:
            out = run(True)
        except Exception:
            out = run(False)

    if (B_pad != B) or (H_pad != H):
        out = out[:B, :H]
    return out


# ---------------------------------------------------------------------------
# Self-test
# ---------------------------------------------------------------------------

if __name__ == "__main__":
    def ref_forward(x, w1, b1, w2, b2):
        # Reference matching the kernel's numerics (bf16 MXU inputs, f32 acc).
        bf = jnp.bfloat16
        h = jnp.maximum(
            jnp.dot(x.astype(bf), w1.astype(bf),
                    preferred_element_type=jnp.float32) + b1, 0.0)
        return jnp.dot(h.astype(bf), w2.astype(bf),
                       preferred_element_type=jnp.float32) + b2

    key = jax.random.PRNGKey(0)
    keys = jax.random.split(key, 10)

    # --- Test 1: small shapes consistent with MLP(input_dim, output_dim,
    #     hidden_dim); output_dim is unused by the module's layers. ---------
    batch, input_dim, hidden_dim = 8, 16, 32
    x = jax.random.normal(keys[0], (batch, input_dim), dtype=jnp.float32)
    # PyTorch Linear stores weight as (out, in); we hold (in, out) == W^T.
    w1 = jax.random.normal(keys[1], (input_dim, hidden_dim), jnp.float32) * 0.1
    b1 = jax.random.normal(keys[2], (hidden_dim,), jnp.float32) * 0.1
    w2 = jax.random.normal(keys[3], (hidden_dim, hidden_dim), jnp.float32) * 0.1
    b2 = jax.random.normal(keys[4], (hidden_dim,), jnp.float32) * 0.1

    out = jax.block_until_ready(mlp_forward(x, w1, b1, w2, b2))
    assert out.shape == (batch, hidden_dim) and out.dtype == x.dtype
    ref = ref_forward(x, w1, b1, w2, b2)
    assert jnp.allclose(out, ref, atol=1e-2, rtol=1e-2), (
        float(jnp.max(jnp.abs(out - ref))))
    ref_f32 = jnp.maximum(x @ w1 + b1, 0.0) @ w2 + b2
    assert jnp.allclose(out, ref_f32, atol=5e-2, rtol=5e-2)

    # --- Test 2: exercise the W2-streaming (large-H / v7x) path on
    #     lane-aligned shapes (no wrapper padding, multiple N tiles). --------
    b2_, d2, h2 = 64, 128, 384
    x2 = jax.random.normal(keys[5], (b2_, d2), dtype=jnp.float32)
    w1_2 = jax.random.normal(keys[6], (d2, h2), jnp.float32) * 0.05
    b1_2 = jax.random.normal(keys[7], (h2,), jnp.float32) * 0.05
    w2_2 = jax.random.normal(keys[8], (h2, h2), jnp.float32) * 0.05
    b2_2 = jax.random.normal(keys[9], (h2,), jnp.float32) * 0.05

    out2 = jax.block_until_ready(
        mlp_forward(x2, w1_2, b1_2, w2_2, b2_2, force_streaming=True))
    assert out2.shape == (b2_, h2)
    ref2 = ref_forward(x2, w1_2, b1_2, w2_2, b2_2)
    assert jnp.allclose(out2, ref2, atol=1e-2, rtol=1e-2), (
        float(jnp.max(jnp.abs(out2 - ref2))))

    print("KERNEL_OK")
</pallas_src>

<mosaic_0001>
module attributes {stable_mosaic.version = 11 : i64} {
  func.func @_mlp_kernel_resident(%arg0: i32, %arg1: memref<16x128xf32, #tpu.memory_space<vmem>>, %arg2: memref<128x128xbf16, #tpu.memory_space<vmem>>, %arg3: memref<1x128xf32, #tpu.memory_space<vmem>>, %arg4: memref<128x128xbf16, #tpu.memory_space<vmem>>, %arg5: memref<1x128xf32, #tpu.memory_space<vmem>>, %arg6: memref<16x128xf32, #tpu.memory_space<vmem>>) attributes {dimension_semantics = [#tpu.dimension_semantics<parallel>], iteration_bounds = array<i64: 1>, scalar_prefetch = 0 : i64, scratch_operands = 0 : i64, tpu.core_type = #tpu.core_type<tc>, window_params = [{transform_indices = @transform_0, window_bounds = array<i64: 16, 128>}, {pipeline_mode = #tpu.pipeline_mode<synchronous>, transform_indices = @transform_1, window_bounds = array<i64: 128, 128>}, {pipeline_mode = #tpu.pipeline_mode<synchronous>, transform_indices = @transform_2, window_bounds = array<i64: 1, 128>}, {pipeline_mode = #tpu.pipeline_mode<synchronous>, transform_indices = @transform_3, window_bounds = array<i64: 128, 128>}, {pipeline_mode = #tpu.pipeline_mode<synchronous>, transform_indices = @transform_4, window_bounds = array<i64: 1, 128>}, {transform_indices = @transform_5, window_bounds = array<i64: 16, 128>}]} {
    %c0 = arith.constant 0 : index
    %c0_0 = arith.constant 0 : index
    %0 = vector.load %arg1[%c0, %c0_0] : memref<16x128xf32, #tpu.memory_space<vmem>>, vector<16x128xf32>
    %1 = arith.truncf %0 : vector<16x128xf32> to vector<16x128xbf16>
    %c0_1 = arith.constant 0 : index
    %c0_2 = arith.constant 0 : index
    %2 = vector.load %arg2[%c0_1, %c0_2] : memref<128x128xbf16, #tpu.memory_space<vmem>>, vector<128x128xbf16>
    %cst = arith.constant dense<0.000000e+00> : vector<16x128xf32>
    %3 = tpu.matmul %1, %2, %cst {dimension_numbers = #tpu.dot_dimension_numbers<[1], [0], [0], [1], [0, 0, 1, 1], [], []>} : vector<16x128xbf16>, vector<128x128xbf16>, vector<16x128xf32> -> vector<16x128xf32>
    %c0_3 = arith.constant 0 : index
    %c0_4 = arith.constant 0 : index
    %4 = vector.load %arg3[%c0_3, %c0_4] : memref<1x128xf32, #tpu.memory_space<vmem>>, vector<1x128xf32>
    %5 = vector.broadcast %4 : vector<1x128xf32> to vector<16x128xf32>
    %6 = arith.addf %3, %5 : vector<16x128xf32>
    %cst_5 = arith.constant 0.000000e+00 : f32
    %7 = vector.broadcast %cst_5 : f32 to vector<16x128xf32>
    %8 = arith.maximumf %6, %7 : vector<16x128xf32>
    %9 = arith.truncf %8 : vector<16x128xf32> to vector<16x128xbf16>
    %c0_6 = arith.constant 0 : index
    %c0_7 = arith.constant 0 : index
    %10 = vector.load %arg4[%c0_6, %c0_7] : memref<128x128xbf16, #tpu.memory_space<vmem>>, vector<128x128xbf16>
    %cst_8 = arith.constant dense<0.000000e+00> : vector<16x128xf32>
    %11 = tpu.matmul %9, %10, %cst_8 {dimension_numbers = #tpu.dot_dimension_numbers<[1], [0], [0], [1], [0, 0, 1, 1], [], []>} : vector<16x128xbf16>, vector<128x128xbf16>, vector<16x128xf32> -> vector<16x128xf32>
    %c0_9 = arith.constant 0 : index
    %c0_10 = arith.constant 0 : index
    %12 = vector.load %arg5[%c0_9, %c0_10] : memref<1x128xf32, #tpu.memory_space<vmem>>, vector<1x128xf32>
    %13 = vector.broadcast %12 : vector<1x128xf32> to vector<16x128xf32>
    %14 = arith.addf %11, %13 : vector<16x128xf32>
    %c0_11 = arith.constant 0 : index
    %c0_12 = arith.constant 0 : index
    %15 = vector.load %arg6[%c0_11, %c0_12] : memref<16x128xf32, #tpu.memory_space<vmem>>, vector<16x128xf32>
    tpu.vector_store %arg6[%c0_11, %c0_12], %14 {strides = array<i32>} : memref<16x128xf32, #tpu.memory_space<vmem>>, vector<16x128xf32>,
    return
  }
  func.func @transform_0(%arg0: i32) -> (i32, i32) {
    %c0_i32 = arith.constant 0 : i32
    %c0_i32_0 = arith.constant 0 : i32
    return %arg0, %c0_i32 : i32, i32
  }
  func.func @transform_1(%arg0: i32) -> (i32, i32) {
    %c0_i32 = arith.constant 0 : i32
    %c0_i32_0 = arith.constant 0 : i32
    %c0_i32_1 = arith.constant 0 : i32
    return %c0_i32, %c0_i32_0 : i32, i32
  }
  func.func @transform_2(%arg0: i32) -> (i32, i32) {
    %c0_i32 = arith.constant 0 : i32
    %c0_i32_0 = arith.constant 0 : i32
    %c0_i32_1 = arith.constant 0 : i32
    return %c0_i32, %c0_i32_0 : i32, i32
  }
  func.func @transform_3(%arg0: i32) -> (i32, i32) {
    %c0_i32 = arith.constant 0 : i32
    %c0_i32_0 = arith.constant 0 : i32
    %c0_i32_1 = arith.constant 0 : i32
    return %c0_i32, %c0_i32_0 : i32, i32
  }
  func.func @transform_4(%arg0: i32) -> (i32, i32) {
    %c0_i32 = arith.constant 0 : i32
    %c0_i32_0 = arith.constant 0 : i32
    %c0_i32_1 = arith.constant 0 : i32
    return %c0_i32, %c0_i32_0 : i32, i32
  }
  func.func @transform_5(%arg0: i32) -> (i32, i32) {
    %c0_i32 = arith.constant 0 : i32
    %c0_i32_0 = arith.constant 0 : i32
    return %arg0, %c0_i32 : i32, i32
  }
}

module attributes {stable_mosaic.version = 11 : i64} {
  func.func @_mlp_kernel_resident(%arg0: i32, %arg1: memref<16x128xf32, #tpu.memory_space<vmem>>, %arg2: memref<128x128xbf16, #tpu.memory_space<vmem>>, %arg3: memref<1x128xf32, #tpu.memory_space<vmem>>, %arg4: memref<128x128xbf16, #tpu.memory_space<vmem>>, %arg5: memref<1x128xf32, #tpu.memory_space<vmem>>, %arg6: memref<16x128xf32, #tpu.memory_space<vmem>>) attributes {dimension_semantics = [#tpu.dimension_semantics<parallel>], iteration_bounds = array<i64: 1>, scalar_prefetch = 0 : i64, scratch_operands = 0 : i64, tpu.core_type = #tpu.core_type<tc>, window_params = [{transform_indices = @transform_0, window_bounds = array<i64: 16, 128>}, {pipeline_mode = #tpu.pipeline_mode<synchronous>, transform_indices = @transform_1, window_bounds = array<i64: 128, 128>}, {pipeline_mode = #tpu.pipeline_mode<synchronous>, transform_indices = @transform_2, window_bounds = array<i64: 1, 128>}, {pipeline_mode = #tpu.pipeline_mode<synchronous>, transform_indices = @transform_3, window_bounds = array<i64: 128, 128>}, {pipeline_mode = #tpu.pipeline_mode<synchronous>, transform_indices = @transform_4, window_bounds = array<i64: 1, 128>}, {transform_indices = @transform_5, window_bounds = array<i64: 16, 128>}]} {
    %c0 = arith.constant 0 : index
    %c0_0 = arith.constant 0 : index
    %0 = vector.load %arg1[%c0, %c0_0] : memref<16x128xf32, #tpu.memory_space<vmem>>, vector<16x128xf32>
    %1 = arith.truncf %0 : vector<16x128xf32> to vector<16x128xbf16>
    %c0_1 = arith.constant 0 : index
    %c0_2 = arith.constant 0 : index
    %2 = vector.load %arg2[%c0_1, %c0_2] : memref<128x128xbf16, #tpu.memory_space<vmem>>, vector<128x128xbf16>
    %cst = arith.constant dense<0.000000e+00> : vector<16x128xf32>
    %3 = tpu.matmul %1, %2, %cst {dimension_numbers = #tpu.dot_dimension_numbers<[1], [0], [0], [1], [0, 0, 1, 1], [], []>} : vector<16x128xbf16>, vector<128x128xbf16>, vector<16x128xf32> -> vector<16x128xf32>
    %c0_3 = arith.constant 0 : index
    %c0_4 = arith.constant 0 : index
    %4 = vector.load %arg3[%c0_3, %c0_4] : memref<1x128xf32, #tpu.memory_space<vmem>>, vector<1x128xf32>
    %5 = vector.broadcast %4 : vector<1x128xf32> to vector<16x128xf32>
    %6 = arith.addf %3, %5 : vector<16x128xf32>
    %cst_5 = arith.constant 0.000000e+00 : f32
    %7 = vector.broadcast %cst_5 : f32 to vector<16x128xf32>
    %8 = arith.maximumf %6, %7 : vector<16x128xf32>
    %9 = arith.truncf %8 : vector<16x128xf32> to vector<16x128xbf16>
    %c0_6 = arith.constant 0 : index
    %c0_7 = arith.constant 0 : index
    %10 = vector.load %arg4[%c0_6, %c0_7] : memref<128x128xbf16, #tpu.memory_space<vmem>>, vector<128x128xbf16>
    %cst_8 = arith.constant dense<0.000000e+00> : vector<16x128xf32>
    %11 = tpu.matmul %9, %10, %cst_8 {dimension_numbers = #tpu.dot_dimension_numbers<[1], [0], [0], [1], [0, 0, 1, 1], [], []>} : vector<16x128xbf16>, vector<128x128xbf16>, vector<16x128xf32> -> vector<16x128xf32>
    %c0_9 = arith.constant 0 : index
    %c0_10 = arith.constant 0 : index
    %12 = vector.load %arg5[%c0_9, %c0_10] : memref<1x128xf32, #tpu.memory_space<vmem>>, vector<1x128xf32>
    %13 = vector.broadcast %12 : vector<1x128xf32> to vector<16x128xf32>
    %14 = arith.addf %11, %13 : vector<16x128xf32>
    %c0_11 = arith.constant 0 : index
    %c0_12 = arith.constant 0 : index
    %15 = vector.load %arg6[%c0_11, %c0_12] : memref<16x128xf32, #tpu.memory_space<vmem>>, vector<16x128xf32>
    tpu.vector_store %arg6[%c0_11, %c0_12], %14 {strides = array<i32>} : memref<16x128xf32, #tpu.memory_space<vmem>>, vector<16x128xf32>,
    return
  }
  func.func @transform_0(%arg0: i32) -> (i32, i32) {
    %c0_i32 = arith.constant 0 : i32
    %c0_i32_0 = arith.constant 0 : i32
    return %arg0, %c0_i32 : i32, i32
  }
  func.func @transform_1(%arg0: i32) -> (i32, i32) {
    %c0_i32 = arith.constant 0 : i32
    %c0_i32_0 = arith.constant 0 : i32
    %c0_i32_1 = arith.constant 0 : i32
    return %c0_i32, %c0_i32_0 : i32, i32
  }
  func.func @transform_2(%arg0: i32) -> (i32, i32) {
    %c0_i32 = arith.constant 0 : i32
    %c0_i32_0 = arith.constant 0 : i32
    %c0_i32_1 = arith.constant 0 : i32
    return %c0_i32, %c0_i32_0 : i32, i32
  }
  func.func @transform_3(%arg0: i32) -> (i32, i32) {
    %c0_i32 = arith.constant 0 : i32
    %c0_i32_0 = arith.constant 0 : i32
    %c0_i32_1 = arith.constant 0 : i32
    return %c0_i32, %c0_i32_0 : i32, i32
  }
  func.func @transform_4(%arg0: i32) -> (i32, i32) {
    %c0_i32 = arith.constant 0 : i32
    %c0_i32_0 = arith.constant 0 : i32
    %c0_i32_1 = arith.constant 0 : i32
    return %c0_i32, %c0_i32_0 : i32, i32
  }
  func.func @transform_5(%arg0: i32) -> (i32, i32) {
    %c0_i32 = arith.constant 0 : i32
    %c0_i32_0 = arith.constant 0 : i32
    return %arg0, %c0_i32 : i32, i32
  }
}

</mosaic_0001>

<llo_original>
// kernel: tpu_custom_call.1
$region0: #{tpu_custom_call.1}
  #allocation0 [shape = 'u32[]', space=smem, size = 0x4, offset = 0x4, fixed_abs, tag = 'smem constant byte address 0x4 - core index']
  #allocation1 [shape = 'u32[72,128]{1,0:T(1,128)}', space=vmem, size = 0x9000, scoped, tag = 'internal scratch']
  %s0 = inlined_call_operand.hbm [shape: f32[16,128], index: 0, kind: input, shape index: {}]
  %s1 = inlined_call_operand.hbm [shape: bf16[128,128], index: 1, kind: input, shape index: {}]
  %s2 = inlined_call_operand.vmem [shape: f32[1,128], index: 2, kind: input, shape index: {}]
  %s3 = inlined_call_operand.hbm [shape: bf16[128,128], index: 3, kind: input, shape index: {}]
  %s4 = inlined_call_operand.vmem [shape: f32[1,128], index: 4, kind: input, shape index: {}]
  %s5 = inlined_call_operand.hbm [shape: f32[16,128], index: 5, kind: output, shape index: {}]
  %s6 = sld [smem:[#allocation0]]
  $region42: #{tpu_custom_call.1} parent=0
    _
  %s8 = ssub.s32 1, %s6
  %s9 = scalar_select 0, %s8, %s6
  $region1: #{tpu_custom_call.1} parent=0
    #allocation2 [shape = 'u8[8192]{0}', space=vmem, size = 0x2000, scoped, tag = 'input window, operand 0, single buffered']
    #allocation3 [shape = 's32[1]{0}', space=sflag, size = 0x4, scoped, tag = 'scoped memory for tpu_custom_call.1']
    #allocation4 [shape = 's32[1]{0}', space=sflag, size = 0x4, scoped, tag = 'scoped memory for tpu_custom_call.1']
    #allocation5 [shape = 'u8[32768]{0}', space=vmem, size = 0x8000, scoped, tag = 'input window, operand 1, single buffered']
    #allocation6 [shape = 's32[1]{0}', space=sflag, size = 0x4, scoped, tag = 'scoped memory for tpu_custom_call.1']
    #allocation7 [shape = 'u8[32768]{0}', space=vmem, size = 0x8000, scoped, tag = 'input window, operand 3, single buffered']
    #allocation8 [shape = 'u8[8192]{0}', space=vmem, size = 0x2000, scoped, tag = 'output window, operand 0, single buffered']
    %10 = vsyncpa [#allocation3], 0
    %11 = vsyncpa [#allocation6], 0
    %12 = vsyncpa [#allocation4], 0
    // Predicated region
    $region2: #{tpu_custom_call.1} parent=1 // pred_check
      _
    $region3: #{tpu_custom_call.1} parent=1 // pred_check_branch
      %14 = sbr.rel (0) target = $region5
    $region4: #{tpu_custom_call.1} parent=1 // pred_region
      %16 = vsyncadd [#allocation3], 0
      %s17 = sshll.u32 %s0, 4
      %s18 = int_to_ptr.hbm [resolvable:$true] %s17
      %s19 = sshll.u32 [#allocation2], 4
      %s20 = int_to_ptr.vmem [resolvable:$true] %s19
      %25 = dma.hbm_to_vmem [thread:$0]  %s18, 256, %s20, [#allocation3], 128, 128, 8
    $region5: #{tpu_custom_call.1} parent=1 // pred_fallthru
      _
    // Predicated region
    $region6: #{tpu_custom_call.1} parent=1 // pred_check
      _
    $region7: #{tpu_custom_call.1} parent=1 // pred_check_branch
      %27 = sbr.rel (0) target = $region9
    $region8: #{tpu_custom_call.1} parent=1 // pred_region
      %29 = vsyncadd [#allocation6], 0
      %s30 = sshll.u32 %s1, 4
      %s31 = int_to_ptr.hbm [resolvable:$true] %s30
      %s32 = sshll.u32 [#allocation5], 4
      %s33 = int_to_ptr.vmem [resolvable:$true] %s32
      %38 = dma.hbm_to_vmem [thread:$0]  %s31, 1024, %s33, [#allocation6], 64, 64, 4
    $region9: #{tpu_custom_call.1} parent=1 // pred_fallthru
      _
    // Predicated region
    $region10: #{tpu_custom_call.1} parent=1 // pred_check
      _
    $region11: #{tpu_custom_call.1} parent=1 // pred_check_branch
      %40 = sbr.rel (0) target = $region13
    $region12: #{tpu_custom_call.1} parent=1 // pred_region
      _
    $region13: #{tpu_custom_call.1} parent=1 // pred_fallthru
      _
    // Predicated region
    $region14: #{tpu_custom_call.1} parent=1 // pred_check
      _
    $region15: #{tpu_custom_call.1} parent=1 // pred_check_branch
      %42 = sbr.rel (0) target = $region17
    $region16: #{tpu_custom_call.1} parent=1 // pred_region
      %44 = vsyncadd [#allocation6], 0
      %s45 = sshll.u32 %s3, 4
      %s46 = int_to_ptr.hbm [resolvable:$true] %s45
      %s47 = sshll.u32 [#allocation7], 4
      %s48 = int_to_ptr.vmem [resolvable:$true] %s47
      %53 = dma.hbm_to_vmem [thread:$0]  %s46, 1024, %s48, [#allocation6], 64, 64, 4
    $region17: #{tpu_custom_call.1} parent=1 // pred_fallthru
      _
    // Predicated region
    $region18: #{tpu_custom_call.1} parent=1 // pred_check
      _
    $region19: #{tpu_custom_call.1} parent=1 // pred_check_branch
      %55 = sbr.rel (0) target = $region21
    $region20: #{tpu_custom_call.1} parent=1 // pred_region
      _
    $region21: #{tpu_custom_call.1} parent=1 // pred_fallthru
      _
    // Predicated region
    $region22: #{tpu_custom_call.1} parent=1 // pred_check
      _
    $region23: #{tpu_custom_call.1} parent=1 // pred_check_branch
      %57 = sbr.rel (0) target = $region25
    $region24: #{tpu_custom_call.1} parent=1 // pred_region
      %59 = dma.done [#allocation3], 256
    $region25: #{tpu_custom_call.1} parent=1 // pred_fallthru
      _
    // Predicated region
    $region26: #{tpu_custom_call.1} parent=1 // pred_check
      _
    $region27: #{tpu_custom_call.1} parent=1 // pred_check_branch
      %61 = sbr.rel (0) target = $region29
    $region28: #{tpu_custom_call.1} parent=1 // pred_region
      %63 = dma.done [#allocation6], 1024
    $region29: #{tpu_custom_call.1} parent=1 // pred_fallthru
      _
    // Predicated region
    $region30: #{tpu_custom_call.1} parent=1 // pred_check
      _
    $region31: #{tpu_custom_call.1} parent=1 // pred_check_branch
      %65 = sbr.rel (0) target = $region33
    $region32: #{tpu_custom_call.1} parent=1 // pred_region
      %67 = dma.done [#allocation6], 1024
    $region33: #{tpu_custom_call.1} parent=1 // pred_fallthru
      _
    %v68 = vld [vmem:[#allocation2] sm:$0xff]
    %v69 = vld [vmem:[#allocation2 + $0x8] sm:$0xff]
    %v70 = vpack.c.bf16 %v69, %v68
    %v71 = vld [vmem:[#allocation5] sm:$0xf]
    %v72 = vld [vmem:[#allocation5 + $0x4] sm:$0xf]
    %v73 = vld [vmem:[#allocation5 + $0x8] sm:$0xf]
    %v74 = vld [vmem:[#allocation5 + $0xc] sm:$0xf]
    %v75 = vld [vmem:[#allocation5 + $0x10] sm:$0xf]
    %v76 = vld [vmem:[#allocation5 + $0x14] sm:$0xf]
    %v77 = vld [vmem:[#allocation5 + $0x18] sm:$0xf]
    %v78 = vld [vmem:[#allocation5 + $0x1c] sm:$0xf]
    %v79 = vld [vmem:[#allocation5 + $0x20] sm:$0xf]
    %v80 = vld [vmem:[#allocation5 + $0x24] sm:$0xf]
    %v81 = vld [vmem:[#allocation5 + $0x28] sm:$0xf]
    %v82 = vld [vmem:[#allocation5 + $0x2c] sm:$0xf]
    %v83 = vld [vmem:[#allocation5 + $0x30] sm:$0xf]
    %v84 = vld [vmem:[#allocation5 + $0x34] sm:$0xf]
    %v85 = vld [vmem:[#allocation5 + $0x38] sm:$0xf]
    %v86 = vld [vmem:[#allocation5 + $0x3c] sm:$0xf]
    %v87 = vld [vmem:[%s2] sm:$0x1]
    %v89 = vperm.slane %v87, 0
    %v107 = vunpack.c.l.b16 %v71
    %v108 = vunpack.c.l.b16 %v72
    %v109 = vunpack.c.l.b16 %v73
    %v110 = vunpack.c.l.b16 %v74
    %v111 = vunpack.c.l.b16 %v75
    %v112 = vunpack.c.l.b16 %v76
    %v113 = vunpack.c.l.b16 %v77
    %v114 = vunpack.c.l.b16 %v78
    %v115 = vunpack.c.l.b16 %v79
    %v116 = vunpack.c.l.b16 %v80
    %v117 = vunpack.c.l.b16 %v81
    %v118 = vunpack.c.l.b16 %v82
    %v119 = vunpack.c.l.b16 %v83
    %v120 = vunpack.c.l.b16 %v84
    %v121 = vunpack.c.l.b16 %v85
    %v122 = vunpack.c.l.b16 %v86
    %v123 = vpack.c.b16 %v108, %v107
    %v124 = vpack.c.b16 %v110, %v109
    %v125 = vpack.c.b16 %v112, %v111
    %v126 = vpack.c.b16 %v114, %v113
    %v127 = vpack.c.b16 %v116, %v115
    %v128 = vpack.c.b16 %v118, %v117
    %v129 = vpack.c.b16 %v120, %v119
    %v130 = vpack.c.b16 %v122, %v121
    %139 = vmatpush.bf16.msra.mxu0 %v130
    %140 = vmatpush.bf16.msra.mxu0 %v129
    %141 = vmatpush.bf16.msra.mxu0 %v128
    %142 = vmatpush.bf16.msra.mxu0 %v127
    %143 = vmatpush.bf16.msra.mxu0 %v126
    %144 = vmatpush.bf16.msra.mxu0 %v125
    %145 = vmatpush.bf16.msra.mxu0 %v124
    %146 = vmatpush.bf16.msra.mxu0 %v123
    %147 = vmatmul.bf16.gmra.mxu0 %v70
    %v148 = vpop.f32.mrf.mxu0
    %v149 = vadd.f32 %v89, %v148
    %v150 = vpop.f32.mrf.mxu0
    %v151 = vadd.f32 %v89, %v150
    %152 = vdwg.mxu0
    %v153 = vmax.f32 %v149, 0.0
    %v154 = vmax.f32 %v151, 0.0
    %v155 = vpack.c.bf16 %v154, %v153
    %v156 = vld [vmem:[#allocation7] sm:$0xf]
    %v157 = vld [vmem:[#allocation7 + $0x4] sm:$0xf]
    %v158 = vld [vmem:[#allocation7 + $0x8] sm:$0xf]
    %v159 = vld [vmem:[#allocation7 + $0xc] sm:$0xf]
    %v160 = vld [vmem:[#allocation7 + $0x10] sm:$0xf]
    %v161 = vld [vmem:[#allocation7 + $0x14] sm:$0xf]
    %v162 = vld [vmem:[#allocation7 + $0x18] sm:$0xf]
    %v163 = vld [vmem:[#allocation7 + $0x1c] sm:$0xf]
    %v164 = vld [vmem:[#allocation7 + $0x20] sm:$0xf]
    %v165 = vld [vmem:[#allocation7 + $0x24] sm:$0xf]
    %v166 = vld [vmem:[#allocation7 + $0x28] sm:$0xf]
    %v167 = vld [vmem:[#allocation7 + $0x2c] sm:$0xf]
    %v168 = vld [vmem:[#allocation7 + $0x30] sm:$0xf]
    %v169 = vld [vmem:[#allocation7 + $0x34] sm:$0xf]
    %v170 = vld [vmem:[#allocation7 + $0x38] sm:$0xf]
    %v171 = vld [vmem:[#allocation7 + $0x3c] sm:$0xf]
    %v172 = vld [vmem:[%s4] sm:$0x1]
    %v174 = vperm.slane %v172, 0
    %v192 = vunpack.c.l.b16 %v156
    %v193 = vunpack.c.l.b16 %v157
    %v194 = vunpack.c.l.b16 %v158
    %v195 = vunpack.c.l.b16 %v159
    %v196 = vunpack.c.l.b16 %v160
    %v197 = vunpack.c.l.b16 %v161
    %v198 = vunpack.c.l.b16 %v162
    %v199 = vunpack.c.l.b16 %v163
    %v200 = vunpack.c.l.b16 %v164
    %v201 = vunpack.c.l.b16 %v165
    %v202 = vunpack.c.l.b16 %v166
    %v203 = vunpack.c.l.b16 %v167
    %v204 = vunpack.c.l.b16 %v168
    %v205 = vunpack.c.l.b16 %v169
    %v206 = vunpack.c.l.b16 %v170
    %v207 = vunpack.c.l.b16 %v171
    %v208 = vpack.c.b16 %v193, %v192
    %v209 = vpack.c.b16 %v195, %v194
    %v210 = vpack.c.b16 %v197, %v196
    %v211 = vpack.c.b16 %v199, %v198
    %v212 = vpack.c.b16 %v201, %v200
    %v213 = vpack.c.b16 %v203, %v202
    %v214 = vpack.c.b16 %v205, %v204
    %v215 = vpack.c.b16 %v207, %v206
    %224 = vmatpush.bf16.msra.mxu0 %v215
    %225 = vmatpush.bf16.msra.mxu0 %v214
    %226 = vmatpush.bf16.msra.mxu0 %v213
    %227 = vmatpush.bf16.msra.mxu0 %v212
    %228 = vmatpush.bf16.msra.mxu0 %v211
    %229 = vmatpush.bf16.msra.mxu0 %v210
    %230 = vmatpush.bf16.msra.mxu0 %v209
    %231 = vmatpush.bf16.msra.mxu0 %v208
    %232 = vmatmul.bf16.gmra.mxu0 %v155
    %v233 = vpop.f32.mrf.mxu0
    %v234 = vadd.f32 %v174, %v233
    %v235 = vpop.f32.mrf.mxu0
    %v236 = vadd.f32 %v174, %v235
    %237 = vdwg.mxu0
    %238 = vst [vmem:[#allocation8] sm:$0xff] %v234
    %239 = vst [vmem:[#allocation8 + $0x8] sm:$0xff] %v236
    // Predicated region
    $region34: #{tpu_custom_call.1} parent=1 // pred_check
      _
    $region35: #{tpu_custom_call.1} parent=1 // pred_check_branch
      %241 = sbr.rel (0) target = $region37
    $region36: #{tpu_custom_call.1} parent=1 // pred_region
      %243 = vsyncadd [#allocation4], 0
      %s244 = sshll.u32 [#allocation8], 4
      %s245 = int_to_ptr.vmem [resolvable:$true] %s244
      %s246 = sshll.u32 %s5, 4
      %s247 = int_to_ptr.hbm [resolvable:$true] %s246
      %252 = dma.vmem_to_hbm [thread:$0]  %s245, 256, %s247, [#allocation4], 128, 128, 8
    $region37: #{tpu_custom_call.1} parent=1 // pred_fallthru
      _
    // Predicated region
    $region38: #{tpu_custom_call.1} parent=1 // pred_check
      _
    $region39: #{tpu_custom_call.1} parent=1 // pred_check_branch
      %254 = sbr.rel (0) target = $region41
    $region40: #{tpu_custom_call.1} parent=1 // pred_region
      %256 = dma.done [#allocation4], 256
    $region41: #{tpu_custom_call.1} parent=1 // pred_fallthru
      _
    %257 = vsyncpa [#allocation3], 1
    %258 = vsyncpa [#allocation6], 1
    %259 = vsyncpa [#allocation4], 1

// kernel: tpu_custom_call.1
$region0: #{tpu_custom_call.1}
  #allocation0 [shape = 'u32[]', space=smem, size = 0x4, offset = 0x4, fixed_abs, tag = 'smem constant byte address 0x4 - core index']
  #allocation1 [shape = 'u32[72,128]{1,0:T(1,128)}', space=vmem, size = 0x9000, scoped, tag = 'internal scratch']
  %s0 = inlined_call_operand.hbm [shape: f32[16,128], index: 0, kind: input, shape index: {}]
  %s1 = inlined_call_operand.hbm [shape: bf16[128,128], index: 1, kind: input, shape index: {}]
  %s2 = inlined_call_operand.vmem [shape: f32[1,128], index: 2, kind: input, shape index: {}]
  %s3 = inlined_call_operand.hbm [shape: bf16[128,128], index: 3, kind: input, shape index: {}]
  %s4 = inlined_call_operand.vmem [shape: f32[1,128], index: 4, kind: input, shape index: {}]
  %s5 = inlined_call_operand.hbm [shape: f32[16,128], index: 5, kind: output, shape index: {}]
  %s6 = sld [smem:[#allocation0]]
  $region42: #{tpu_custom_call.1} parent=0
    _
  %s8 = ssub.s32 1, %s6
  %s9 = scalar_select 0, %s8, %s6
  $region1: #{tpu_custom_call.1} parent=0
    #allocation2 [shape = 'u8[8192]{0}', space=vmem, size = 0x2000, scoped, tag = 'input window, operand 0, single buffered']
    #allocation3 [shape = 's32[1]{0}', space=sflag, size = 0x4, scoped, tag = 'scoped memory for tpu_custom_call.1']
    #allocation4 [shape = 's32[1]{0}', space=sflag, size = 0x4, scoped, tag = 'scoped memory for tpu_custom_call.1']
    #allocation5 [shape = 'u8[32768]{0}', space=vmem, size = 0x8000, scoped, tag = 'input window, operand 1, single buffered']
    #allocation6 [shape = 's32[1]{0}', space=sflag, size = 0x4, scoped, tag = 'scoped memory for tpu_custom_call.1']
    #allocation7 [shape = 'u8[32768]{0}', space=vmem, size = 0x8000, scoped, tag = 'input window, operand 3, single buffered']
    #allocation8 [shape = 'u8[8192]{0}', space=vmem, size = 0x2000, scoped, tag = 'output window, operand 0, single buffered']
    %10 = vsyncpa [#allocation3], 0
    %11 = vsyncpa [#allocation6], 0
    %12 = vsyncpa [#allocation4], 0
    // Predicated region
    $region2: #{tpu_custom_call.1} parent=1 // pred_check
      _
    $region3: #{tpu_custom_call.1} parent=1 // pred_check_branch
      %14 = sbr.rel (0) target = $region5
    $region4: #{tpu_custom_call.1} parent=1 // pred_region
      %16 = vsyncadd [#allocation3], 0
      %s17 = sshll.u32 %s0, 4
      %s18 = int_to_ptr.hbm [resolvable:$true] %s17
      %s19 = sshll.u32 [#allocation2], 4
      %s20 = int_to_ptr.vmem [resolvable:$true] %s19
      %25 = dma.hbm_to_vmem [thread:$0]  %s18, 256, %s20, [#allocation3], 128, 128, 8
    $region5: #{tpu_custom_call.1} parent=1 // pred_fallthru
      _
    // Predicated region
    $region6: #{tpu_custom_call.1} parent=1 // pred_check
      _
    $region7: #{tpu_custom_call.1} parent=1 // pred_check_branch
      %27 = sbr.rel (0) target = $region9
    $region8: #{tpu_custom_call.1} parent=1 // pred_region
      %29 = vsyncadd [#allocation6], 0
      %s30 = sshll.u32 %s1, 4
      %s31 = int_to_ptr.hbm [resolvable:$true] %s30
      %s32 = sshll.u32 [#allocation5], 4
      %s33 = int_to_ptr.vmem [resolvable:$true] %s32
      %38 = dma.hbm_to_vmem [thread:$0]  %s31, 1024, %s33, [#allocation6], 64, 64, 4
    $region9: #{tpu_custom_call.1} parent=1 // pred_fallthru
      _
    // Predicated region
    $region10: #{tpu_custom_call.1} parent=1 // pred_check
      _
    $region11: #{tpu_custom_call.1} parent=1 // pred_check_branch
      %40 = sbr.rel (0) target = $region13
    $region12: #{tpu_custom_call.1} parent=1 // pred_region
      _
    $region13: #{tpu_custom_call.1} parent=1 // pred_fallthru
      _
    // Predicated region
    $region14: #{tpu_custom_call.1} parent=1 // pred_check
      _
    $region15: #{tpu_custom_call.1} parent=1 // pred_check_branch
      %42 = sbr.rel (0) target = $region17
    $region16: #{tpu_custom_call.1} parent=1 // pred_region
      %44 = vsyncadd [#allocation6], 0
      %s45 = sshll.u32 %s3, 4
      %s46 = int_to_ptr.hbm [resolvable:$true] %s45
      %s47 = sshll.u32 [#allocation7], 4
      %s48 = int_to_ptr.vmem [resolvable:$true] %s47
      %53 = dma.hbm_to_vmem [thread:$0]  %s46, 1024, %s48, [#allocation6], 64, 64, 4
    $region17: #{tpu_custom_call.1} parent=1 // pred_fallthru
      _
    // Predicated region
    $region18: #{tpu_custom_call.1} parent=1 // pred_check
      _
    $region19: #{tpu_custom_call.1} parent=1 // pred_check_branch
      %55 = sbr.rel (0) target = $region21
    $region20: #{tpu_custom_call.1} parent=1 // pred_region
      _
    $region21: #{tpu_custom_call.1} parent=1 // pred_fallthru
      _
    // Predicated region
    $region22: #{tpu_custom_call.1} parent=1 // pred_check
      _
    $region23: #{tpu_custom_call.1} parent=1 // pred_check_branch
      %57 = sbr.rel (0) target = $region25
    $region24: #{tpu_custom_call.1} parent=1 // pred_region
      %59 = dma.done [#allocation3], 256
    $region25: #{tpu_custom_call.1} parent=1 // pred_fallthru
      _
    // Predicated region
    $region26: #{tpu_custom_call.1} parent=1 // pred_check
      _
    $region27: #{tpu_custom_call.1} parent=1 // pred_check_branch
      %61 = sbr.rel (0) target = $region29
    $region28: #{tpu_custom_call.1} parent=1 // pred_region
      %63 = dma.done [#allocation6], 1024
    $region29: #{tpu_custom_call.1} parent=1 // pred_fallthru
      _
    // Predicated region
    $region30: #{tpu_custom_call.1} parent=1 // pred_check
      _
    $region31: #{tpu_custom_call.1} parent=1 // pred_check_branch
      %65 = sbr.rel (0) target = $region33
    $region32: #{tpu_custom_call.1} parent=1 // pred_region
      %67 = dma.done [#allocation6], 1024
    $region33: #{tpu_custom_call.1} parent=1 // pred_fallthru
      _
    %v68 = vld [vmem:[#allocation2] sm:$0xff]
    %v69 = vld [vmem:[#allocation2 + $0x8] sm:$0xff]
    %v70 = vpack.c.bf16 %v69, %v68
    %v71 = vld [vmem:[#allocation5] sm:$0xf]
    %v72 = vld [vmem:[#allocation5 + $0x4] sm:$0xf]
    %v73 = vld [vmem:[#allocation5 + $0x8] sm:$0xf]
    %v74 = vld [vmem:[#allocation5 + $0xc] sm:$0xf]
    %v75 = vld [vmem:[#allocation5 + $0x10] sm:$0xf]
    %v76 = vld [vmem:[#allocation5 + $0x14] sm:$0xf]
    %v77 = vld [vmem:[#allocation5 + $0x18] sm:$0xf]
    %v78 = vld [vmem:[#allocation5 + $0x1c] sm:$0xf]
    %v79 = vld [vmem:[#allocation5 + $0x20] sm:$0xf]
    %v80 = vld [vmem:[#allocation5 + $0x24] sm:$0xf]
    %v81 = vld [vmem:[#allocation5 + $0x28] sm:$0xf]
    %v82 = vld [vmem:[#allocation5 + $0x2c] sm:$0xf]
    %v83 = vld [vmem:[#allocation5 + $0x30] sm:$0xf]
    %v84 = vld [vmem:[#allocation5 + $0x34] sm:$0xf]
    %v85 = vld [vmem:[#allocation5 + $0x38] sm:$0xf]
    %v86 = vld [vmem:[#allocation5 + $0x3c] sm:$0xf]
    %v87 = vld [vmem:[%s2] sm:$0x1]
    %v89 = vperm.slane %v87, 0
    %v107 = vunpack.c.l.b16 %v71
    %v108 = vunpack.c.l.b16 %v72
    %v109 = vunpack.c.l.b16 %v73
    %v110 = vunpack.c.l.b16 %v74
    %v111 = vunpack.c.l.b16 %v75
    %v112 = vunpack.c.l.b16 %v76
    %v113 = vunpack.c.l.b16 %v77
    %v114 = vunpack.c.l.b16 %v78
    %v115 = vunpack.c.l.b16 %v79
    %v116 = vunpack.c.l.b16 %v80
    %v117 = vunpack.c.l.b16 %v81
    %v118 = vunpack.c.l.b16 %v82
    %v119 = vunpack.c.l.b16 %v83
    %v120 = vunpack.c.l.b16 %v84
    %v121 = vunpack.c.l.b16 %v85
    %v122 = vunpack.c.l.b16 %v86
    %v123 = vpack.c.b16 %v108, %v107
    %v124 = vpack.c.b16 %v110, %v109
    %v125 = vpack.c.b16 %v112, %v111
    %v126 = vpack.c.b16 %v114, %v113
    %v127 = vpack.c.b16 %v116, %v115
    %v128 = vpack.c.b16 %v118, %v117
    %v129 = vpack.c.b16 %v120, %v119
    %v130 = vpack.c.b16 %v122, %v121
    %139 = vmatpush.bf16.msra.mxu0 %v130
    %140 = vmatpush.bf16.msra.mxu0 %v129
    %141 = vmatpush.bf16.msra.mxu0 %v128
    %142 = vmatpush.bf16.msra.mxu0 %v127
    %143 = vmatpush.bf16.msra.mxu0 %v126
    %144 = vmatpush.bf16.msra.mxu0 %v125
    %145 = vmatpush.bf16.msra.mxu0 %v124
    %146 = vmatpush.bf16.msra.mxu0 %v123
    %147 = vmatmul.bf16.gmra.mxu0 %v70
    %v148 = vpop.f32.mrf.mxu0
    %v149 = vadd.f32 %v89, %v148
    %v150 = vpop.f32.mrf.mxu0
    %v151 = vadd.f32 %v89, %v150
    %152 = vdwg.mxu0
    %v153 = vmax.f32 %v149, 0.0
    %v154 = vmax.f32 %v151, 0.0
    %v155 = vpack.c.bf16 %v154, %v153
    %v156 = vld [vmem:[#allocation7] sm:$0xf]
    %v157 = vld [vmem:[#allocation7 + $0x4] sm:$0xf]
    %v158 = vld [vmem:[#allocation7 + $0x8] sm:$0xf]
    %v159 = vld [vmem:[#allocation7 + $0xc] sm:$0xf]
    %v160 = vld [vmem:[#allocation7 + $0x10] sm:$0xf]
    %v161 = vld [vmem:[#allocation7 + $0x14] sm:$0xf]
    %v162 = vld [vmem:[#allocation7 + $0x18] sm:$0xf]
    %v163 = vld [vmem:[#allocation7 + $0x1c] sm:$0xf]
    %v164 = vld [vmem:[#allocation7 + $0x20] sm:$0xf]
    %v165 = vld [vmem:[#allocation7 + $0x24] sm:$0xf]
    %v166 = vld [vmem:[#allocation7 + $0x28] sm:$0xf]
    %v167 = vld [vmem:[#allocation7 + $0x2c] sm:$0xf]
    %v168 = vld [vmem:[#allocation7 + $0x30] sm:$0xf]
    %v169 = vld [vmem:[#allocation7 + $0x34] sm:$0xf]
    %v170 = vld [vmem:[#allocation7 + $0x38] sm:$0xf]
    %v171 = vld [vmem:[#allocation7 + $0x3c] sm:$0xf]
    %v172 = vld [vmem:[%s4] sm:$0x1]
    %v174 = vperm.slane %v172, 0
    %v192 = vunpack.c.l.b16 %v156
    %v193 = vunpack.c.l.b16 %v157
    %v194 = vunpack.c.l.b16 %v158
    %v195 = vunpack.c.l.b16 %v159
    %v196 = vunpack.c.l.b16 %v160
    %v197 = vunpack.c.l.b16 %v161
    %v198 = vunpack.c.l.b16 %v162
    %v199 = vunpack.c.l.b16 %v163
    %v200 = vunpack.c.l.b16 %v164
    %v201 = vunpack.c.l.b16 %v165
    %v202 = vunpack.c.l.b16 %v166
    %v203 = vunpack.c.l.b16 %v167
    %v204 = vunpack.c.l.b16 %v168
    %v205 = vunpack.c.l.b16 %v169
    %v206 = vunpack.c.l.b16 %v170
    %v207 = vunpack.c.l.b16 %v171
    %v208 = vpack.c.b16 %v193, %v192
    %v209 = vpack.c.b16 %v195, %v194
    %v210 = vpack.c.b16 %v197, %v196
    %v211 = vpack.c.b16 %v199, %v198
    %v212 = vpack.c.b16 %v201, %v200
    %v213 = vpack.c.b16 %v203, %v202
    %v214 = vpack.c.b16 %v205, %v204
    %v215 = vpack.c.b16 %v207, %v206
    %224 = vmatpush.bf16.msra.mxu0 %v215
    %225 = vmatpush.bf16.msra.mxu0 %v214
    %226 = vmatpush.bf16.msra.mxu0 %v213
    %227 = vmatpush.bf16.msra.mxu0 %v212
    %228 = vmatpush.bf16.msra.mxu0 %v211
    %229 = vmatpush.bf16.msra.mxu0 %v210
    %230 = vmatpush.bf16.msra.mxu0 %v209
    %231 = vmatpush.bf16.msra.mxu0 %v208
    %232 = vmatmul.bf16.gmra.mxu0 %v155
    %v233 = vpop.f32.mrf.mxu0
    %v234 = vadd.f32 %v174, %v233
    %v235 = vpop.f32.mrf.mxu0
    %v236 = vadd.f32 %v174, %v235
    %237 = vdwg.mxu0
    %238 = vst [vmem:[#allocation8] sm:$0xff] %v234
    %239 = vst [vmem:[#allocation8 + $0x8] sm:$0xff] %v236
    // Predicated region
    $region34: #{tpu_custom_call.1} parent=1 // pred_check
      _
    $region35: #{tpu_custom_call.1} parent=1 // pred_check_branch
      %241 = sbr.rel (0) target = $region37
    $region36: #{tpu_custom_call.1} parent=1 // pred_region
      %243 = vsyncadd [#allocation4], 0
      %s244 = sshll.u32 [#allocation8], 4
      %s245 = int_to_ptr.vmem [resolvable:$true] %s244
      %s246 = sshll.u32 %s5, 4
      %s247 = int_to_ptr.hbm [resolvable:$true] %s246
      %252 = dma.vmem_to_hbm [thread:$0]  %s245, 256, %s247, [#allocation4], 128, 128, 8
    $region37: #{tpu_custom_call.1} parent=1 // pred_fallthru
      _
    // Predicated region
    $region38: #{tpu_custom_call.1} parent=1 // pred_check
      _
    $region39: #{tpu_custom_call.1} parent=1 // pred_check_branch
      %254 = sbr.rel (0) target = $region41
    $region40: #{tpu_custom_call.1} parent=1 // pred_region
      %256 = dma.done [#allocation4], 256
    $region41: #{tpu_custom_call.1} parent=1 // pred_fallthru
      _
    %257 = vsyncpa [#allocation3], 1
    %258 = vsyncpa [#allocation6], 1
    %259 = vsyncpa [#allocation4], 1

</llo_original>
